<compile_context>
chip_gen: v7x
topology: tpu7x:2x2x1
jax: 0.10.0
libtpu: 0.0.40
codegen_flags: <defaults>
</compile_context>

<pallas_src>
import numpy as np
import jax
import jax.numpy as jnp
from jax.experimental import pallas as pl
from jax.experimental.pallas import tpu as pltpu


def _ceil_to(x, m):
    return ((x + m - 1) // m) * m


# ----------------------- host-built banded conv weights -----------------------

def banded_conv_weight_ncw(w, L):
    """Conv1d(k, 'same') as a dense banded matrix for NCW-flattened inputs.

    Input rows:  x_flat[n, c*L + l]       = x_ncw[n, c, l]
    Output cols: o[n, l*Cout + co]
    W_big[c*L + (l + k - pad), l*Cout + co] = w[k, c, co]   (zeros elsewhere)
    """
    w = np.asarray(w, dtype=np.float32)
    K, Cin, Cout = w.shape
    pad = (K - 1) // 2
    Wb = np.zeros((Cin * L, L * Cout), np.float32)
    rows = np.arange(Cin) * L
    for k in range(K):
        for l in range(L):
            src = l + k - pad
            if 0 <= src < L:
                Wb[rows + src, l * Cout:(l + 1) * Cout] += w[k]
    return jnp.asarray(Wb, dtype=jnp.bfloat16)


def banded_conv_weight_nlc(w, L):
    """Conv1d(k, 'same') as a dense banded matrix for lane-dense NLC frames.

    Input rows:  red[a, l*C + c]
    Output cols: h[a, l*Cout + co]
    W_big[(l + k - pad)*C + c, l*Cout + co] = w[k, c, co]
    """
    w = np.asarray(w, dtype=np.float32)
    K, C, Cout = w.shape
    pad = (K - 1) // 2
    Wb = np.zeros((L * C, L * Cout), np.float32)
    for k in range(K):
        for l in range(L):
            src = l + k - pad
            if 0 <= src < L:
                Wb[src * C:(src + 1) * C, l * Cout:(l + 1) * Cout] += w[k]
    return jnp.asarray(Wb, dtype=jnp.bfloat16)


# --------------------------- read-convolver kernel ---------------------------

def _read_conv_kernel(x_ref, w_ref, b_ref, o_ref):
    # x_ref: (bn, Cin*L) bf16 ; w_ref: (Cin*L, L*Cout) bf16 banded conv weight
    # b_ref: (1, L*Cout) f32 (bias tiled over L) ; o_ref: (bn, L*Cout) bf16
    acc = jnp.dot(x_ref[...], w_ref[...], preferred_element_type=jnp.float32)
    o_ref[...] = jnp.maximum(acc + b_ref[...], 0.0).astype(o_ref.dtype)


def read_conv_relu(x_ncw, w_big, b, L, Cout, *, block_reads=512):
    """Per-read Conv1d(k, 'same') + ReLU (network0 / network1 surrogate).

    x_ncw: (N, Cin, L) reads in PyTorch NCW layout.
    w_big: (Cin*L, L*Cout) bf16 banded conv weight (host-built).
    Returns lane-dense frames (N, L*Cout) bf16 with layout [l*Cout + c].
    """
    N = x_ncw.shape[0]
    CinL = w_big.shape[0]
    # NCW is contiguous -> the flatten is free; bf16 halves the HBM read stream.
    x_flat = x_ncw.reshape(N, CinL).astype(jnp.bfloat16)
    b_t = jnp.tile(b.reshape(1, Cout).astype(jnp.float32), (1, L))

    bn = max(8, min((block_reads // 8) * 8, _ceil_to(N, 8)))
    # Keep >=2 grid steps when possible so v7x's two TensorCores both get work.
    if N > 8:
        bn = min(bn, _ceil_to(pl.cdiv(N, 2), 8))
    grid = (pl.cdiv(N, bn),)

    flops = 2 * N * CinL * (L * Cout)
    bytes_accessed = 2 * (N * CinL + CinL * L * Cout + N * L * Cout) + 4 * L * Cout

    return pl.pallas_call(
        _read_conv_kernel,
        out_shape=jax.ShapeDtypeStruct((N, L * Cout), jnp.bfloat16),
        grid=grid,
        in_specs=[
            pl.BlockSpec((bn, CinL), lambda i: (i, 0)),          # lane-dense 2D block
            pl.BlockSpec((CinL, L * Cout), lambda i: (0, 0)),    # resident weight
            pl.BlockSpec((1, L * Cout), lambda i: (0, 0)),
        ],
        out_specs=pl.BlockSpec((bn, L * Cout), lambda i: (i, 0)),
        compiler_params=pltpu.CompilerParams(
            dimension_semantics=("parallel",)),
        cost_estimate=pl.CostEstimate(flops=flops, transcendentals=0,
                                      bytes_accessed=bytes_accessed),
    )(x_flat, w_big, b_t)


# ------------------------------ fused tail kernel -----------------------------
# segment-sum -> depth normalize (f32) -> site conv + ReLU (banded weights,
# pre-split per data type so the channel concat never materializes)
# -> mean-pool + linear head, all in one pallas_call.

def _tail_kernel(s0_ref, s1_ref, d0_ref, d1_ref, f0_ref, f1_ref,
                 w2a_ref, w2b_ref, b2_ref, w3_ref, b3_ref, o_ref):
    # s{0,1}: (ba, R{0,1}) bf16 0/1 segment matrices ; d{0,1}: (ba, 1) f32 1/depth
    # f{0,1}: (R{0,1}, L*C{0,1}) bf16 frames (VMEM-resident across grid steps)
    # w2a/w2b: (L*C{0,1}, L*Chid) bf16 banded site-conv weights
    # b2: (1, L*Chid) f32 ; w3: (1, L*Chid) f32 (= tile(w3)/L) ; b3: (1, 1) f32
    # o_ref: (ba, 1) f32
    red0 = jnp.dot(s0_ref[...], f0_ref[...], preferred_element_type=jnp.float32)
    red1 = jnp.dot(s1_ref[...], f1_ref[...], preferred_element_type=jnp.float32)
    red0 = (red0 * d0_ref[...]).astype(jnp.bfloat16)     # depth normalize in f32
    red1 = (red1 * d1_ref[...]).astype(jnp.bfloat16)

    h = jnp.dot(red0, w2a_ref[...], preferred_element_type=jnp.float32)
    h = h + jnp.dot(red1, w2b_ref[...], preferred_element_type=jnp.float32)
    h = jnp.maximum(h + b2_ref[...], 0.0)                # (ba, L*Chid) f32

    # mean-pool over L + linear head fused: lane-dense reduce against tile(w3)/L.
    o_ref[...] = jnp.sum(h * w3_ref[...], axis=-1, keepdims=True) + b3_ref[...]


def fused_tail(S0, S1, inv_d0, inv_d1, f0, f1, w2a_big, w2b_big, b2, w3, b3,
               *, L, Chid, block_alleles=128):
    A, R0 = S0.shape
    _, R1 = S1.shape
    LC0 = f0.shape[1]
    LC1 = f1.shape[1]
    b2_t = jnp.tile(b2.reshape(1, Chid).astype(jnp.float32), (1, L))
    w3_rep = jnp.tile(w3.reshape(1, Chid).astype(jnp.float32), (1, L)) / float(L)
    b3r = b3.reshape(1, 1).astype(jnp.float32)

    ba = max(8, min((block_alleles // 8) * 8, _ceil_to(A, 8)))
    if A > 8:
        ba = min(ba, _ceil_to(pl.cdiv(A, 2), 8))     # >=2 steps for v7x when possible
    grid = (pl.cdiv(A, ba),)

    flops = (2 * A * (R0 * LC0 + R1 * LC1)
             + 2 * A * (LC0 + LC1) * L * Chid + 4 * A * L * Chid)
    bytes_accessed = 2 * (A * (R0 + R1) + R0 * LC0 + R1 * LC1
                          + (LC0 + LC1) * L * Chid) + 4 * (2 * A + 2 * L * Chid + A)

    return pl.pallas_call(
        _tail_kernel,
        out_shape=jax.ShapeDtypeStruct((A, 1), jnp.float32),
        grid=grid,
        in_specs=[
            pl.BlockSpec((ba, R0), lambda i: (i, 0)),
            pl.BlockSpec((ba, R1), lambda i: (i, 0)),
            pl.BlockSpec((ba, 1), lambda i: (i, 0)),
            pl.BlockSpec((ba, 1), lambda i: (i, 0)),
            pl.BlockSpec((R0, LC0), lambda i: (0, 0)),   # frames resident across steps
            pl.BlockSpec((R1, LC1), lambda i: (0, 0)),
            pl.BlockSpec((LC0, L * Chid), lambda i: (0, 0)),
            pl.BlockSpec((LC1, L * Chid), lambda i: (0, 0)),
            pl.BlockSpec((1, L * Chid), lambda i: (0, 0)),
            pl.BlockSpec((1, L * Chid), lambda i: (0, 0)),
            pl.BlockSpec((1, 1), lambda i: (0, 0)),
        ],
        out_specs=pl.BlockSpec((ba, 1), lambda i: (i, 0)),
        compiler_params=pltpu.CompilerParams(
            dimension_semantics=("parallel",)),
        cost_estimate=pl.CostEstimate(flops=flops, transcendentals=0,
                                      bytes_accessed=bytes_accessed),
    )(S0, S1, inv_d0, inv_d1, f0, f1, w2a_big, w2b_big, b2_t, w3_rep, b3r)


# ------------------------------- glue / model --------------------------------

def segment_matrix(counts, total_reads):
    """torch.split + per-allele torch.sum + torch.stack as a 0/1 indicator matrix
    (exact in bf16).  Depth normalization is applied later in the f32 epilogue."""
    counts = np.asarray(counts, dtype=np.int64)
    ids = np.repeat(np.arange(counts.shape[0]), counts)
    assert ids.shape[0] == total_reads
    S = (np.arange(counts.shape[0])[:, None] == ids[None, :]).astype(np.float32)
    return jnp.asarray(S, dtype=jnp.bfloat16)
    # TODO(synk): for very deep pileups, replace the dense (A, R) segment matrix with
    # PrefetchScalarGridSpec over per-allele read offsets to avoid O(A*R) work.


def inv_depth(depth_multiplier, num_alleles):
    if depth_multiplier is None:
        return jnp.ones((num_alleles, 1), jnp.float32)
    d = jnp.asarray(depth_multiplier, jnp.float32).reshape(num_alleles, 1)
    return 1.0 / d


class ReadConvolverHybridDNN:
    def __init__(self, params, seq_len):
        self.p = params
        self.L = seq_len
        _, _, C0 = params["w0"].shape
        _, _, C1 = params["w1"].shape
        _, Ctot, Chid = params["w2"].shape
        assert Ctot == C0 + C1
        self.C0, self.C1, self.Chid = C0, C1, Chid
        # Host-built banded dense conv weights -> every kernel operand is lane-dense.
        self.w0_big = banded_conv_weight_ncw(params["w0"], seq_len)
        self.w1_big = banded_conv_weight_ncw(params["w1"], seq_len)
        w2 = np.asarray(params["w2"], dtype=np.float32)
        self.w2a_big = banded_conv_weight_nlc(w2[:, :C0, :], seq_len)
        self.w2b_big = banded_conv_weight_nlc(w2[:, C0:, :], seq_len)

    def forward(self, tensors, num_alleles_per_site, num_reads_per_allele,
                depth_multiplier=(None, None), *, block_reads=512, block_alleles=128):
        p, L = self.p, self.L
        x0, x1 = tensors
        R0, R1 = x0.shape[0], x1.shape[0]
        A = len(num_reads_per_allele[0])

        # network0 / network1 (Pallas): one banded MXU matmul + ReLU per block.
        f0 = read_conv_relu(x0, self.w0_big, p["b0"], L, self.C0,
                            block_reads=block_reads)           # (R0, L*C0) bf16
        f1 = read_conv_relu(x1, self.w1_big, p["b1"], L, self.C1,
                            block_reads=block_reads)           # (R1, L*C1) bf16

        # Host-side uncollate bookkeeping (reads per allele are contiguous,
        # exactly like torch.split on the collated tensor).
        S0 = segment_matrix(num_reads_per_allele[0], R0)
        S1 = segment_matrix(num_reads_per_allele[1], R1)
        d0 = inv_depth(depth_multiplier[0], A)
        d1 = inv_depth(depth_multiplier[1], A)

        # Fused tail: segment-sum -> normalize -> site conv -> pool -> linear head.
        scores = fused_tail(S0, S1, d0, d1, f0, f1, self.w2a_big, self.w2b_big,
                            p["b2"], p["w3"], p["b3"],
                            L=L, Chid=self.Chid, block_alleles=block_alleles)  # (A,1)

        # Per-site list of allelic predictions (host-side static split).
        out, start = [], 0
        for n in num_alleles_per_site:
            out.append(scores[start:start + n])
            start += n
        return out
        # TODO(synk): DataParallel (multi-GPU) wrapping has no Pallas analogue; omitted.


# ---------------------------- pure-JAX reference -----------------------------
# Mirrors the kernel numerics (bf16 MXU operands / frames, f32 accumulation).

def _conv1d_same_relu_ref(x_nlc, w, b):
    K = w.shape[0]
    pad = (K - 1) // 2
    L = x_nlc.shape[1]
    xb = x_nlc.astype(jnp.bfloat16)
    wb = w.astype(jnp.bfloat16)
    xp = jnp.pad(xb, ((0, 0), (pad, pad), (0, 0)))
    acc = sum(jnp.einsum('nlc,co->nlo', xp[:, k:k + L, :], wb[k],
                         preferred_element_type=jnp.float32) for k in range(K))
    return jnp.maximum(acc + b.astype(jnp.float32), 0.0)


def reference_forward(params, tensors, num_reads_per_allele,
                      depth_multiplier=(None, None)):
    p = params
    x0 = jnp.transpose(tensors[0].astype(jnp.float32), (0, 2, 1))
    x1 = jnp.transpose(tensors[1].astype(jnp.float32), (0, 2, 1))
    f0 = _conv1d_same_relu_ref(x0, p["w0"], p["b0"]).astype(jnp.bfloat16)
    f1 = _conv1d_same_relu_ref(x1, p["w1"], p["b1"]).astype(jnp.bfloat16)
    A = len(num_reads_per_allele[0])
    S0 = segment_matrix(num_reads_per_allele[0], f0.shape[0])
    S1 = segment_matrix(num_reads_per_allele[1], f1.shape[0])
    r0 = jnp.einsum('ar,rlc->alc', S0, f0, preferred_element_type=jnp.float32)
    r1 = jnp.einsum('ar,rlc->alc', S1, f1, preferred_element_type=jnp.float32)
    d0 = inv_depth(depth_multiplier[0], A).reshape(A, 1, 1)
    d1 = inv_depth(depth_multiplier[1], A).reshape(A, 1, 1)
    reduced = jnp.concatenate([(r0 * d0).astype(jnp.bfloat16),
                               (r1 * d1).astype(jnp.bfloat16)], axis=-1)
    h = _conv1d_same_relu_ref(reduced, p["w2"], p["b2"])
    pooled = jnp.mean(h, axis=1)
    return (jnp.sum(pooled * p["w3"].reshape(1, -1).astype(jnp.float32),
                    axis=-1, keepdims=True) + p["b3"].reshape(1, 1))


# ----------------------------------- main -------------------------------------

if __name__ == "__main__":
    key = jax.random.PRNGKey(0)
    ks = jax.random.split(key, 10)

    K, L = 3, 16
    Cin0, Cin1 = 8, 4          # input channels of the two data types
    C0, C1 = 8, 8              # read-convolver output channels
    Chid = 32                  # GraphSearcher hidden channels

    params = {
        "w0": 0.1 * jax.random.normal(ks[0], (K, Cin0, C0), jnp.float32),
        "b0": 0.1 * jax.random.normal(ks[1], (C0,), jnp.float32),
        "w1": 0.1 * jax.random.normal(ks[2], (K, Cin1, C1), jnp.float32),
        "b1": 0.1 * jax.random.normal(ks[3], (C1,), jnp.float32),
        "w2": 0.1 * jax.random.normal(ks[4], (K, C0 + C1, Chid), jnp.float32),
        "b2": 0.1 * jax.random.normal(ks[5], (Chid,), jnp.float32),
        "w3": 0.1 * jax.random.normal(ks[6], (Chid,), jnp.float32),
        "b3": 0.1 * jax.random.normal(ks[7], (1,), jnp.float32),
    }

    num_alleles_per_site = [2, 1, 2]            # 3 sites, 5 alleles total
    num_reads_per_allele0 = [3, 2, 4, 1, 2]     # 12 reads (data type 0)
    num_reads_per_allele1 = [2, 3, 1, 2, 2]     # 10 reads (data type 1)

    tensors0 = jax.random.normal(ks[8], (12, Cin0, L), jnp.float32)   # NCW
    tensors1 = jax.random.normal(ks[9], (10, Cin1, L), jnp.float32)   # NCW

    model = ReadConvolverHybridDNN(params, seq_len=L)
    # Small block sizes so the toy problem still exercises a multi-step parallel grid.
    out = model.forward((tensors0, tensors1), num_alleles_per_site,
                        (num_reads_per_allele0, num_reads_per_allele1),
                        block_reads=8, block_alleles=8)
    for o in out:
        jax.block_until_ready(o)

    got = jnp.concatenate(out, axis=0)
    ref = reference_forward(params, (tensors0, tensors1),
                            (num_reads_per_allele0, num_reads_per_allele1))
    assert got.shape == ref.shape, (got.shape, ref.shape)
    max_err = float(jnp.max(jnp.abs(got - ref)))
    assert jnp.allclose(got, ref, atol=2e-3, rtol=2e-3), (got, ref, max_err)
    print("KERNEL_OK")
</pallas_src>

<mosaic_0001>
module attributes {stable_mosaic.version = 11 : i64} {
  func.func @_read_conv_kernel(%arg0: i32, %arg1: memref<8x128xbf16, #tpu.memory_space<vmem>>, %arg2: memref<128x128xbf16, #tpu.memory_space<vmem>>, %arg3: memref<1x128xf32, #tpu.memory_space<vmem>>, %arg4: memref<8x128xbf16, #tpu.memory_space<vmem>>) attributes {dimension_semantics = [#tpu.dimension_semantics<parallel>], iteration_bounds = array<i64: 2>, scalar_prefetch = 0 : i64, scratch_operands = 0 : i64, tpu.core_type = #tpu.core_type<tc>, window_params = [{transform_indices = @transform_0, window_bounds = array<i64: 8, 128>}, {pipeline_mode = #tpu.pipeline_mode<synchronous>, transform_indices = @transform_1, window_bounds = array<i64: 128, 128>}, {pipeline_mode = #tpu.pipeline_mode<synchronous>, transform_indices = @transform_2, window_bounds = array<i64: 1, 128>}, {transform_indices = @transform_3, window_bounds = array<i64: 8, 128>}]} {
    %c0 = arith.constant 0 : index
    %c0_0 = arith.constant 0 : index
    %0 = vector.load %arg1[%c0, %c0_0] : memref<8x128xbf16, #tpu.memory_space<vmem>>, vector<8x128xbf16>
    %c0_1 = arith.constant 0 : index
    %c0_2 = arith.constant 0 : index
    %1 = vector.load %arg2[%c0_1, %c0_2] : memref<128x128xbf16, #tpu.memory_space<vmem>>, vector<128x128xbf16>
    %cst = arith.constant dense<0.000000e+00> : vector<8x128xf32>
    %2 = tpu.matmul %0, %1, %cst {dimension_numbers = #tpu.dot_dimension_numbers<[1], [0], [0], [1], [0, 0, 1, 1], [], []>} : vector<8x128xbf16>, vector<128x128xbf16>, vector<8x128xf32> -> vector<8x128xf32>
    %c0_3 = arith.constant 0 : index
    %c0_4 = arith.constant 0 : index
    %3 = vector.load %arg3[%c0_3, %c0_4] : memref<1x128xf32, #tpu.memory_space<vmem>>, vector<1x128xf32>
    %4 = vector.broadcast %3 : vector<1x128xf32> to vector<8x128xf32>
    %5 = arith.addf %2, %4 : vector<8x128xf32>
    %cst_5 = arith.constant 0.000000e+00 : f32
    %6 = vector.broadcast %cst_5 : f32 to vector<8x128xf32>
    %7 = arith.maximumf %5, %6 : vector<8x128xf32>
    %8 = arith.truncf %7 : vector<8x128xf32> to vector<8x128xbf16>
    %c0_6 = arith.constant 0 : index
    %c0_7 = arith.constant 0 : index
    %9 = vector.load %arg4[%c0_6, %c0_7] : memref<8x128xbf16, #tpu.memory_space<vmem>>, vector<8x128xbf16>
    tpu.vector_store %arg4[%c0_6, %c0_7], %8 {strides = array<i32>} : memref<8x128xbf16, #tpu.memory_space<vmem>>, vector<8x128xbf16>,
    return
  }
  func.func @transform_0(%arg0: i32) -> (i32, i32) {
    %c0_i32 = arith.constant 0 : i32
    %c0_i32_0 = arith.constant 0 : i32
    return %arg0, %c0_i32 : i32, i32
  }
  func.func @transform_1(%arg0: i32) -> (i32, i32) {
    %c0_i32 = arith.constant 0 : i32
    %c0_i32_0 = arith.constant 0 : i32
    %c0_i32_1 = arith.constant 0 : i32
    return %c0_i32, %c0_i32_0 : i32, i32
  }
  func.func @transform_2(%arg0: i32) -> (i32, i32) {
    %c0_i32 = arith.constant 0 : i32
    %c0_i32_0 = arith.constant 0 : i32
    %c0_i32_1 = arith.constant 0 : i32
    return %c0_i32, %c0_i32_0 : i32, i32
  }
  func.func @transform_3(%arg0: i32) -> (i32, i32) {
    %c0_i32 = arith.constant 0 : i32
    %c0_i32_0 = arith.constant 0 : i32
    return %arg0, %c0_i32 : i32, i32
  }
}

</mosaic_0001>

<llo_original>
// kernel: tpu_custom_call.1
$region0: #{tpu_custom_call.1}
  #allocation0 [shape = 'u32[]', space=smem, size = 0x4, offset = 0x4, fixed_abs, tag = 'smem constant byte address 0x4 - core index']
  #allocation1 [shape = 'u32[144,128]{1,0:T(1,128)}', space=vmem, size = 0x12000, scoped, tag = 'internal scratch']
  %s0 = inlined_call_operand.hbm [shape: bf16[12,128], index: 0, kind: input, shape index: {}]
  %s1 = inlined_call_operand.hbm [shape: bf16[128,128], index: 1, kind: input, shape index: {}]
  %s2 = inlined_call_operand.vmem [shape: f32[1,128], index: 2, kind: input, shape index: {}]
  %s3 = inlined_call_operand.hbm [shape: bf16[12,128], index: 3, kind: output, shape index: {}]
  %s4 = sld [smem:[#allocation0]]
  $region53: #{tpu_custom_call.1} parent=0
    _
  %s6 = ssub.s32 1, %s4
  %s7 = scalar_select 0, %s6, %s4
  $region1: #{tpu_custom_call.1} parent=0
    #allocation2 [shape = 'u8[4096]{0}', space=vmem, size = 0x1000, scoped, tag = 'input window, operand 0']
    #allocation3 [shape = 's32[2]{0}', space=sflag, size = 0x8, scoped, tag = 'scoped memory for tpu_custom_call.1']
    #allocation4 [shape = 's32[2]{0}', space=sflag, size = 0x8, scoped, tag = 'scoped memory for tpu_custom_call.1']
    #allocation5 [shape = 'u8[32768]{0}', space=vmem, size = 0x8000, scoped, tag = 'input window, operand 1, single buffered']
    #allocation6 [shape = 's32[1]{0}', space=sflag, size = 0x4, scoped, tag = 'scoped memory for tpu_custom_call.1']
    #allocation7 [shape = 'u8[4096]{0}', space=vmem, size = 0x1000, scoped, tag = 'output window, operand 0']
    %8 = vsyncpa [#allocation3], 0
    %s9 = scalar_lea.sflag [#allocation3], 1
    %10 = vsyncpa %s9, 0
    %11 = vsyncpa [#allocation6], 0
    %12 = vsyncpa [#allocation4], 0
    %s13 = scalar_lea.sflag [#allocation4], 1
    %14 = vsyncpa %s13, 0
    loop: start=0, step=1, limit=4
    $region2: #{tpu_custom_call.1} parent=1 // loop_pre_header
      _
    $region3: #{tpu_custom_call.1} parent=1 // loop_header
      %s16 = sphi 0, %s20
      %p17 = scmp.ge.s32.totalorder %s16, 4
      %s26 = sphi 0, %s28
      %s29 = sphi 0, %s26
      %s30 = sphi 0, %s29
      %s46 = sphi 0, %s30
      %s50 = sphi 0, %s50
      %s52 = sphi 0, %s50
      %s53 = sphi 0, %s52
      %s67 = sphi 0, %s53
      %s71 = sphi 0, %s71
      %s73 = sphi 0, %s71
      %s74 = sphi 0, %s73
      %s88 = sphi 0, %s74
      %s94 = sphi 0, %s96
      %s97 = sphi 0, %s94
      %s98 = sphi 0, %s97
      %s114 = sphi 0, %s98
    $region4: #{tpu_custom_call.1} parent=1 // loop_header_branch
      %19 = sbr.rel (%p17) target = $region8
    $region5: #{tpu_custom_call.1} parent=1 // loop_body
      %s21 = ssub.s32 %s16, 1
      %s22 = ssub.s32 %s16, 2
      %s23 = sadd.s32 %s16, 1
      %s24 = ssub.s32 %s16, %s23
      %p25 = scmp.eq.s32.totalorder %s24, 0
      %s27 = sadd.s32 %s26, 1
      %s28 = scalar_select %p25, %s26, %s27
      %p31 = pneg %p25
      %p32 = scmp.eq.s32.totalorder %s16, 1
      %p33 = por %p31, %p32
      %p34 = scmp.ne.s32.totalorder %s26, %s29
      %p35 = scmp.eq.s32.totalorder %s16, 0
      %p36 = por %p34, %p35
      %p37 = scmp.ne.s32.totalorder %s26, %s29
      %p38 = scmp.eq.s32.totalorder %s21, 1
      %p39 = por %p37, %p38
      %p40 = scmp.ne.s32.totalorder %s29, %s30
      %p41 = scmp.eq.s32.totalorder %s21, 0
      %p42 = por %p40, %p41
      %p43 = scmp.ne.s32.totalorder %s29, %s30
      %p44 = scmp.eq.s32.totalorder %s22, 1
      %p45 = por %p43, %p44
      %p47 = scmp.ne.s32.totalorder %s30, %s46
      %p48 = scmp.eq.s32.totalorder %s22, 0
      %p49 = por %p47, %p48
      %s51 = sadd.s32 %s50, 1
      %p54 = scmp.eq.s32.totalorder %s16, 1
      %p55 = scmp.ne.s32.totalorder %s50, %s52
      %p56 = scmp.eq.s32.totalorder %s16, 0
      %p57 = por %p55, %p56
      %p58 = scmp.ne.s32.totalorder %s50, %s52
      %p59 = scmp.eq.s32.totalorder %s21, 1
      %p60 = por %p58, %p59
      %p61 = scmp.ne.s32.totalorder %s52, %s53
      %p62 = scmp.eq.s32.totalorder %s21, 0
      %p63 = por %p61, %p62
      %p64 = scmp.ne.s32.totalorder %s52, %s53
      %p65 = scmp.eq.s32.totalorder %s22, 1
      %p66 = por %p64, %p65
      %p68 = scmp.ne.s32.totalorder %s53, %s67
      %p69 = scmp.eq.s32.totalorder %s22, 0
      %p70 = por %p68, %p69
      %s72 = sadd.s32 %s71, 1
      %p75 = scmp.eq.s32.totalorder %s16, 1
      %p76 = scmp.ne.s32.totalorder %s71, %s73
      %p77 = scmp.eq.s32.totalorder %s16, 0
      %p78 = por %p76, %p77
      %p79 = scmp.ne.s32.totalorder %s71, %s73
      %p80 = scmp.eq.s32.totalorder %s21, 1
      %p81 = por %p79, %p80
      %p82 = scmp.ne.s32.totalorder %s73, %s74
      %p83 = scmp.eq.s32.totalorder %s21, 0
      %p84 = por %p82, %p83
      %p85 = scmp.ne.s32.totalorder %s73, %s74
      %p86 = scmp.eq.s32.totalorder %s22, 1
      %p87 = por %p85, %p86
      %p89 = scmp.ne.s32.totalorder %s74, %s88
      %p90 = scmp.eq.s32.totalorder %s22, 0
      %p91 = por %p89, %p90
      %s92 = ssub.s32 %s16, %s23
      %p93 = scmp.eq.s32.totalorder %s92, 0
      %s95 = sadd.s32 %s94, 1
      %s96 = scalar_select %p93, %s94, %s95
      %p99 = pneg %p93
      %p100 = scmp.eq.s32.totalorder %s16, 1
      %p101 = por %p99, %p100
      %p102 = scmp.ne.s32.totalorder %s94, %s97
      %p103 = scmp.eq.s32.totalorder %s16, 0
      %p104 = por %p102, %p103
      %p105 = scmp.ne.s32.totalorder %s94, %s97
      %p106 = scmp.eq.s32.totalorder %s21, 1
      %p107 = por %p105, %p106
      %p108 = scmp.ne.s32.totalorder %s97, %s98
      %p109 = scmp.eq.s32.totalorder %s21, 0
      %p110 = por %p108, %p109
      %p111 = scmp.ne.s32.totalorder %s97, %s98
      %p112 = scmp.eq.s32.totalorder %s22, 1
      %p113 = por %p111, %p112
      %p115 = scmp.ne.s32.totalorder %s98, %s114
      %p116 = scmp.eq.s32.totalorder %s22, 0
      %p117 = por %p115, %p116
      %p118 = scmp.le.s32.totalorder 1, %s16
      %p119 = scmp.lt.s32.totalorder %s16, 3
      %p120 = pnand %p118, %p119
      %p121 = pneg %p120
      // Predicated region
      $region9: #{tpu_custom_call.1} parent=5 // pred_check
        _
      $region10: #{tpu_custom_call.1} parent=5 // pred_check_branch
        %123 = sbr.rel (%p120) target = $region12
      $region11: #{tpu_custom_call.1} parent=5 // pred_region
        %s124 = ssub.s32 %s16, 1
        // Predicated region
        $region13: #{tpu_custom_call.1} parent=11 // pred_check
          %p125 = pneg %p63
        $region14: #{tpu_custom_call.1} parent=11 // pred_check_branch
          %127 = sbr.rel (%p125) target = $region16
        $region15: #{tpu_custom_call.1} parent=11 // pred_region
          %s129 = ssub.s32 1024, 1024
          %130 = vsyncadd [#allocation6], %s129
          %s131 = sshll.u32 [#allocation5], 4
          %s132 = int_to_ptr.vmem [resolvable:$true] %s131
          %137 = dma.hbm_to_vmem [thread:$0]  %s1, 1024, %s132, [#allocation6], 64, 64, 4
        $region16: #{tpu_custom_call.1} parent=11 // pred_fallthru
          _
        // Predicated region
        $region17: #{tpu_custom_call.1} parent=11 // pred_check
          %p138 = pneg %p84
        $region18: #{tpu_custom_call.1} parent=11 // pred_check_branch
          %140 = sbr.rel (%p138) target = $region20
        $region19: #{tpu_custom_call.1} parent=11 // pred_region
          _
        $region20: #{tpu_custom_call.1} parent=11 // pred_fallthru
          _
      $region12: #{tpu_custom_call.1} parent=5 // pred_fallthru
        _
      %p141 = scmp.lt.s32.totalorder %s16, 2
      // Predicated region
      $region21: #{tpu_custom_call.1} parent=5 // pred_check
        %p142 = pneg %p141
      $region22: #{tpu_custom_call.1} parent=5 // pred_check_branch
        %144 = sbr.rel (%p142) target = $region24
      $region23: #{tpu_custom_call.1} parent=5 // pred_region
        // Predicated region
        $region25: #{tpu_custom_call.1} parent=23 // pred_check
          %p145 = pneg %p36
        $region26: #{tpu_custom_call.1} parent=23 // pred_check_branch
          %147 = sbr.rel (%p145) target = $region28
        $region27: #{tpu_custom_call.1} parent=23 // pred_region
          %s148 = sand.u32 %s26, 1
          %s149 = scalar_lea.sflag [#allocation3], %s148
          %s150 = sand.u32 %s26, 1
          %s151 = smul.addr %s150, 4
          %s152 = scalar_lea.vmem [#allocation2], %s151
          %s154 = ssub.s32 64, 64
          %155 = vsyncadd %s149, %s154
          %s156 = smul.addr %s16, 64
          %s157 = scalar_lea.hbm %s0, %s156
          %s159 = sshll.u32 %s152, 4
          %s160 = int_to_ptr.vmem [resolvable:$true] %s159
          %162 = dma.hbm_to_vmem [thread:$0]  %s157, 64, %s160, %s149
        $region28: #{tpu_custom_call.1} parent=23 // pred_fallthru
          _
      $region24: #{tpu_custom_call.1} parent=5 // pred_fallthru
        _
      %p163 = scmp.le.s32.totalorder 1, %s16
      %p164 = scmp.lt.s32.totalorder %s16, 3
      %p165 = pnand %p163, %p164
      %p166 = pneg %p165
      // Predicated region
      $region29: #{tpu_custom_call.1} parent=5 // pred_check
        _
      $region30: #{tpu_custom_call.1} parent=5 // pred_check_branch
        %168 = sbr.rel (%p165) target = $region32
      $region31: #{tpu_custom_call.1} parent=5 // pred_region
        %s169 = ssub.s32 %s16, 1
        %s170 = sand.u32 %s29, 1
        %s171 = scalar_lea.sflag [#allocation3], %s170
        %s172 = sand.u32 %s29, 1
        %s173 = smul.addr %s172, 4
        %s174 = scalar_lea.vmem [#allocation2], %s173
        // Predicated region
        $region33: #{tpu_custom_call.1} parent=31 // pred_check
          %p175 = pneg %p42
        $region34: #{tpu_custom_call.1} parent=31 // pred_check_branch
          %177 = sbr.rel (%p175) target = $region36
        $region35: #{tpu_custom_call.1} parent=31 // pred_region
          %178 = dma.done %s171, 64
        $region36: #{tpu_custom_call.1} parent=31 // pred_fallthru
          _
        // Predicated region
        $region37: #{tpu_custom_call.1} parent=31 // pred_check
          %p179 = pneg %p63
        $region38: #{tpu_custom_call.1} parent=31 // pred_check_branch
          %181 = sbr.rel (%p179) target = $region40
        $region39: #{tpu_custom_call.1} parent=31 // pred_region
          %182 = dma.done [#allocation6], 1024
        $region40: #{tpu_custom_call.1} parent=31 // pred_fallthru
          _
        %s183 = sand.u32 %s29, 1
        %s184 = scalar_lea.sflag [#allocation3], %s183
        %s185 = sand.u32 %s29, 1
        %s186 = smul.addr %s185, 4
        %s187 = scalar_lea.vmem [#allocation2], %s186
        %p188 = pneg %p42
        %p189 = pneg %p39
        %p190 = pneg %p63
        %p191 = pneg %p60
        %p192 = pneg %p84
        %p193 = pneg %p81
        %p194 = pneg %p110
        %p195 = pneg %p107
        %s196 = sand.u32 %s97, 1
        %s197 = scalar_lea.sflag [#allocation4], %s196
        %s198 = sand.u32 %s97, 1
        %s199 = smul.addr %s198, 4
        %s200 = scalar_lea.vmem [#allocation7], %s199
        %v202 = vld [vmem:[%s174] sm:$0xf]
        %v203 = vld [vmem:[#allocation5] sm:$0xf]
        %v204 = vld [vmem:[#allocation5 + $0x4] sm:$0xf]
        %v205 = vld [vmem:[#allocation5 + $0x8] sm:$0xf]
        %v206 = vld [vmem:[#allocation5 + $0xc] sm:$0xf]
        %v207 = vld [vmem:[#allocation5 + $0x10] sm:$0xf]
        %v208 = vld [vmem:[#allocation5 + $0x14] sm:$0xf]
        %v209 = vld [vmem:[#allocation5 + $0x18] sm:$0xf]
        %v210 = vld [vmem:[#allocation5 + $0x1c] sm:$0xf]
        %v211 = vld [vmem:[#allocation5 + $0x20] sm:$0xf]
        %v212 = vld [vmem:[#allocation5 + $0x24] sm:$0xf]
        %v213 = vld [vmem:[#allocation5 + $0x28] sm:$0xf]
        %v214 = vld [vmem:[#allocation5 + $0x2c] sm:$0xf]
        %v215 = vld [vmem:[#allocation5 + $0x30] sm:$0xf]
        %v216 = vld [vmem:[#allocation5 + $0x34] sm:$0xf]
        %v217 = vld [vmem:[#allocation5 + $0x38] sm:$0xf]
        %v218 = vld [vmem:[#allocation5 + $0x3c] sm:$0xf]
        %v219 = vld [vmem:[%s2] sm:$0x1]
        %v221 = vlaneseq
        %v222 = vshrl.u32 %v221, 7
        %v223 = vsub.s32 0, %v222
        %v224 = vrot.slane %v219, %v223
        %v242 = vunpack.c.l.b16 %v203
        %v243 = vunpack.c.l.b16 %v204
        %v244 = vunpack.c.l.b16 %v205
        %v245 = vunpack.c.l.b16 %v206
        %v246 = vunpack.c.l.b16 %v207
        %v247 = vunpack.c.l.b16 %v208
        %v248 = vunpack.c.l.b16 %v209
        %v249 = vunpack.c.l.b16 %v210
        %v250 = vunpack.c.l.b16 %v211
        %v251 = vunpack.c.l.b16 %v212
        %v252 = vunpack.c.l.b16 %v213
        %v253 = vunpack.c.l.b16 %v214
        %v254 = vunpack.c.l.b16 %v215
        %v255 = vunpack.c.l.b16 %v216
        %v256 = vunpack.c.l.b16 %v217
        %v257 = vunpack.c.l.b16 %v218
        %v258 = vpack.c.b16 %v243, %v242
        %v259 = vpack.c.b16 %v245, %v244
        %v260 = vpack.c.b16 %v247, %v246
        %v261 = vpack.c.b16 %v249, %v248
        %v262 = vpack.c.b16 %v251, %v250
        %v263 = vpack.c.b16 %v253, %v252
        %v264 = vpack.c.b16 %v255, %v254
        %v265 = vpack.c.b16 %v257, %v256
        %274 = vmatprep.subr.bf16.mxu0 0
        %275 = vmatpush1.bf16.msra.mxu0 %v258
        %276 = vmatprep.subr.bf16.mxu0 0
        %277 = vmatpush1.bf16.msra.mxu0 %v259
        %278 = vmatprep.subr.bf16.mxu0 0
        %279 = vmatpush1.bf16.msra.mxu0 %v260
        %280 = vmatprep.subr.bf16.mxu0 0
        %281 = vmatpush1.bf16.msra.mxu0 %v261
        %282 = vmatprep.subr.bf16.mxu0 0
        %283 = vmatpush1.bf16.msra.mxu0 %v262
        %284 = vmatprep.subr.bf16.mxu0 0
        %285 = vmatpush1.bf16.msra.mxu0 %v263
        %286 = vmatprep.subr.bf16.mxu0 0
        %287 = vmatpush1.bf16.msra.mxu0 %v264
        %288 = vmatprep.subr.bf16.mxu0 0
        %289 = vmatpush1.bf16.msra.mxu0 %v265
        %290 = vmatprep.subr.bf16.mxu0 0
        %291 = vmatpush1.bf16.msra.mxu0 0
        %292 = vmatprep.subr.bf16.mxu0 0
        %293 = vmatpush1.bf16.msra.mxu0 0
        %294 = vmatprep.subr.bf16.mxu0 0
        %295 = vmatpush1.bf16.msra.mxu0 0
        %296 = vmatprep.subr.bf16.mxu0 0
        %297 = vmatpush1.bf16.msra.mxu0 0
        %298 = vmatprep.subr.bf16.mxu0 0
        %299 = vmatpush1.bf16.msra.mxu0 0
        %300 = vmatprep.subr.bf16.mxu0 0
        %301 = vmatpush1.bf16.msra.mxu0 0
        %302 = vmatprep.subr.bf16.mxu0 0
        %303 = vmatpush1.bf16.msra.mxu0 0
        %304 = vmatprep.subr.bf16.mxu0 0
        %305 = vmatpush1.bf16.msra.mxu0 0
        %306 = vmatprep.mubr.bf16.mxu0 0
        %307 = vmatmul.mubr.bf16.gmra.mrb[0].mxu0 %v202
        %v308 = vpop.f32.mrb[0].mxu0
        %v309 = vadd.f32 %v224, %v308
        %v310 = vpop.f32.mrb[0].mxu0
        %v311 = vpop.f32.mrb[0].mxu0
        %v312 = vpop.f32.mrb[0].mxu0
        %313 = vdwg.mxu0
        %v314 = vmax.f32 %v309, 0.0
        %v315 = vpack.c.bf16 %v314, %v314
        %316 = vst [vmem:[%s200] sm:$0xf] %v315
        %s317 = sand.u32 %s97, 1
        %s318 = scalar_lea.sflag [#allocation4], %s317
        %s319 = sand.u32 %s97, 1
        %s320 = smul.addr %s319, 4
        %s321 = scalar_lea.vmem [#allocation7], %s320
        // Predicated region
        $region41: #{tpu_custom_call.1} parent=31 // pred_check
          %p322 = pneg %p107
        $region42: #{tpu_custom_call.1} parent=31 // pred_check_branch
          %324 = sbr.rel (%p322) target = $region44
        $region43: #{tpu_custom_call.1} parent=31 // pred_region
          %s326 = ssub.s32 64, 64
          %327 = vsyncadd %s318, %s326
          %s328 = smul.addr %s21, 64
          %s329 = scalar_lea.hbm %s3, %s328
          %s331 = sshll.u32 %s321, 4
          %s332 = int_to_ptr.vmem [resolvable:$true] %s331
          %334 = dma.vmem_to_hbm [thread:$0]  %s332, 64, %s329, %s318
        $region44: #{tpu_custom_call.1} parent=31 // pred_fallthru
          _
      $region32: #{tpu_custom_call.1} parent=5 // pred_fallthru
        _
      %p335 = scmp.le.s32.totalorder 2, %s16
      // Predicated region
      $region45: #{tpu_custom_call.1} parent=5 // pred_check
        %p336 = pneg %p335
      $region46: #{tpu_custom_call.1} parent=5 // pred_check_branch
        %338 = sbr.rel (%p336) target = $region48
      $region47: #{tpu_custom_call.1} parent=5 // pred_region
        %s339 = ssub.s32 %s16, 2
        // Predicated region
        $region49: #{tpu_custom_call.1} parent=47 // pred_check
          %p340 = pneg %p113
        $region50: #{tpu_custom_call.1} parent=47 // pred_check_branch
          %342 = sbr.rel (%p340) target = $region52
        $region51: #{tpu_custom_call.1} parent=47 // pred_region
          %s343 = sand.u32 %s98, 1
          %s344 = scalar_lea.sflag [#allocation4], %s343
          %s345 = sand.u32 %s98, 1
          %s346 = smul.addr %s345, 4
          %s347 = scalar_lea.vmem [#allocation7], %s346
          %348 = dma.done %s344, 64
        $region52: #{tpu_custom_call.1} parent=47 // pred_fallthru
          _
      $region48: #{tpu_custom_call.1} parent=5 // pred_fallthru
        _
    $region6: #{tpu_custom_call.1} parent=1 // loop_footer
      %s20 = sadd.s32 1, %s16
    $region7: #{tpu_custom_call.1} parent=1 // loop_footer_branch
      %15 = sbr.rel target = $region3
    $region8: #{tpu_custom_call.1} parent=1 // loop_exit
      _
    %349 = vsyncpa [#allocation3], 1
    %s350 = scalar_lea.sflag [#allocation3], 1
    %351 = vsyncpa %s350, 1
    %352 = vsyncpa [#allocation6], 1
    %353 = vsyncpa [#allocation4], 1
    %s354 = scalar_lea.sflag [#allocation4], 1
    %355 = vsyncpa %s354, 1

</llo_original>
